<compile_context>
chip_gen: v7x
topology: tpu7x:2x2x1
jax: 0.10.0
libtpu: 0.0.40
codegen_flags: <defaults>
</compile_context>

<pallas_src>
import jax
import jax.numpy as jnp
from jax.experimental import pallas as pl
from jax.experimental.pallas import tpu as pltpu


def _td3_critic2_kernel(s_ref, a_ref, w1s_ref, w1a_ref, b1_ref,
                        w2_ref, b2_ref, w3_ref, b3_ref, o_ref):
    # Layer 1: concat([state, action]) @ W1 + b1, expressed as two matmuls (identical math).
    h1 = jnp.dot(s_ref[...], w1s_ref[...], preferred_element_type=jnp.float32)
    h1 = h1 + jnp.dot(a_ref[...], w1a_ref[...], preferred_element_type=jnp.float32)
    h1 = jnp.maximum(h1 + b1_ref[...], 0.0)
    # Layer 2 + ReLU.
    h2 = jnp.dot(h1, w2_ref[...], preferred_element_type=jnp.float32) + b2_ref[...]
    h2 = jnp.maximum(h2, 0.0)
    # Layer 3 (output columns zero-padded to a lane-dense width; extra columns are exact zeros).
    q = jnp.dot(h2, w3_ref[...], preferred_element_type=jnp.float32) + b3_ref[...]
    o_ref[...] = q.astype(o_ref.dtype)


def td3_critic2_forward(state, action, params, *, block_rows=512):
    """Forward pass matching TD3_Critic2.forward(state, action) -> (q1, q2).

    state:  (B, state_dim)  f32
    action: (B, action_dim) f32
    params: (w1, b1, w2, b2, w3, b3) with
      w1: (state_dim+action_dim, hidden1), b1: (1, hidden1)
      w2: (hidden1, hidden2),              b2: (1, hidden2)
      w3: (hidden2, output_size),          b3: (1, output_size)
    """
    w1, b1, w2, b2, w3, b3 = params
    B, state_dim = state.shape
    _, action_dim = action.shape
    input_size, hidden1 = w1.shape
    hidden2, output_size = w3.shape
    assert input_size == state_dim + action_dim

    # Split W1 so that concat(state, action) @ W1 == state @ W1s + action @ W1a.
    w1s = w1[:state_dim]
    w1a = w1[state_dim:]

    # Lane-dense output head: pad the last Linear to a multiple of 128 output columns.
    out_pad = max(128, pl.cdiv(output_size, 128) * 128)
    w3p = jnp.pad(w3, ((0, 0), (0, out_pad - output_size)))
    b3p = jnp.pad(b3, ((0, 0), (0, out_pad - output_size)))

    # Batch tile size: as large as requested (VMEM use is tiny at these widths),
    # sublane-aligned when it is not the full batch.
    if B <= block_rows:
        tb = B
    else:
        tb = max(8, (block_rows // 8) * 8)
    grid = (pl.cdiv(B, tb),)

    rowmap = lambda i: (i, 0)     # batch-tiled operands
    constmap = lambda i: (0, 0)   # VMEM-resident weights/biases (no re-DMA across steps)

    flops = 2 * B * (input_size * hidden1 + hidden1 * hidden2 + hidden2 * out_pad)
    bytes_accessed = 4 * (B * (state_dim + action_dim + out_pad)
                          + input_size * hidden1 + hidden1
                          + hidden1 * hidden2 + hidden2
                          + hidden2 * out_pad + out_pad)

    q_padded = pl.pallas_call(
        _td3_critic2_kernel,
        out_shape=jax.ShapeDtypeStruct((B, out_pad), jnp.float32),
        grid=grid,
        in_specs=[
            pl.BlockSpec((tb, state_dim), rowmap),
            pl.BlockSpec((tb, action_dim), rowmap),
            pl.BlockSpec(w1s.shape, constmap),
            pl.BlockSpec(w1a.shape, constmap),
            pl.BlockSpec(b1.shape, constmap),
            pl.BlockSpec(w2.shape, constmap),
            pl.BlockSpec(b2.shape, constmap),
            pl.BlockSpec(w3p.shape, constmap),
            pl.BlockSpec(b3p.shape, constmap),
        ],
        out_specs=pl.BlockSpec((tb, out_pad), rowmap),
        compiler_params=pltpu.CompilerParams(dimension_semantics=("parallel",)),
        cost_estimate=pl.CostEstimate(flops=flops, transcendentals=0,
                                      bytes_accessed=bytes_accessed),
    )(state, action, w1s, w1a, b1, w2, b2, w3p, b3p)

    q = q_padded[:, :output_size]
    # forward() computes x1 and x2 with the SAME layers (linear1/2/3); linear4/5/6 are unused,
    # so both returned critics are numerically identical. Compute once, return twice.
    return q, q


def init_params(key, input_size, hidden1, hidden2, output_size):
    """nn.Linear default init: U(-1/sqrt(fan_in), 1/sqrt(fan_in)), weights pre-transposed."""
    ks = jax.random.split(key, 6)
    b_in = 1.0 / jnp.sqrt(input_size)
    b_h1 = 1.0 / jnp.sqrt(hidden1)
    b_h2 = 1.0 / jnp.sqrt(hidden2)
    w1 = jax.random.uniform(ks[0], (input_size, hidden1), jnp.float32, -b_in, b_in)
    b1 = jax.random.uniform(ks[1], (1, hidden1), jnp.float32, -b_in, b_in)
    w2 = jax.random.uniform(ks[2], (hidden1, hidden2), jnp.float32, -b_h1, b_h1)
    b2 = jax.random.uniform(ks[3], (1, hidden2), jnp.float32, -b_h1, b_h1)
    w3 = jax.random.uniform(ks[4], (hidden2, output_size), jnp.float32, -b_h2, b_h2)
    b3 = jax.random.uniform(ks[5], (1, output_size), jnp.float32, -b_h2, b_h2)
    return w1, b1, w2, b2, w3, b3


if __name__ == "__main__":
    key = jax.random.PRNGKey(0)
    kp, ks, ka = jax.random.split(key, 3)

    batch = 64
    state_dim, action_dim = 16, 4
    input_size = state_dim + action_dim
    hidden1, hidden2, output_size = 32, 32, 1

    params = init_params(kp, input_size, hidden1, hidden2, output_size)
    state = jax.random.normal(ks, (batch, state_dim), jnp.float32)
    action = jax.random.normal(ka, (batch, action_dim), jnp.float32)

    # block_rows=16 exercises the batch grid (grid=(4,)) even at this small demo size.
    q1, q2 = td3_critic2_forward(state, action, params, block_rows=16)
    q1, q2 = jax.block_until_ready((q1, q2))

    # Plain-JAX reference == PyTorch forward (both heads use linear1/2/3).
    w1, b1, w2, b2, w3, b3 = params
    xu = jnp.concatenate([state, action], axis=1)
    ref = jnp.maximum(xu @ w1 + b1, 0.0)
    ref = jnp.maximum(ref @ w2 + b2, 0.0)
    ref = ref @ w3 + b3

    assert q1.shape == (batch, output_size) and q2.shape == (batch, output_size)
    assert jnp.allclose(q1, ref, atol=1e-4, rtol=1e-4)
    assert jnp.allclose(q2, ref, atol=1e-4, rtol=1e-4)

    print("KERNEL_OK")
</pallas_src>

<mosaic_0001>
module attributes {stable_mosaic.version = 11 : i64} {
  func.func @_td3_critic2_kernel(%arg0: i32, %arg1: memref<16x16xf32, #tpu.memory_space<vmem>>, %arg2: memref<16x4xf32, #tpu.memory_space<vmem>>, %arg3: memref<16x32xf32, #tpu.memory_space<vmem>>, %arg4: memref<4x32xf32, #tpu.memory_space<vmem>>, %arg5: memref<1x32xf32, #tpu.memory_space<vmem>>, %arg6: memref<32x32xf32, #tpu.memory_space<vmem>>, %arg7: memref<1x32xf32, #tpu.memory_space<vmem>>, %arg8: memref<32x128xf32, #tpu.memory_space<vmem>>, %arg9: memref<1x128xf32, #tpu.memory_space<vmem>>, %arg10: memref<16x128xf32, #tpu.memory_space<vmem>>) attributes {dimension_semantics = [#tpu.dimension_semantics<parallel>], iteration_bounds = array<i64: 4>, scalar_prefetch = 0 : i64, scratch_operands = 0 : i64, tpu.core_type = #tpu.core_type<tc>, window_params = [{transform_indices = @transform_0, window_bounds = array<i64: 16, 16>}, {transform_indices = @transform_1, window_bounds = array<i64: 16, 4>}, {pipeline_mode = #tpu.pipeline_mode<synchronous>, transform_indices = @transform_2, window_bounds = array<i64: 16, 32>}, {pipeline_mode = #tpu.pipeline_mode<synchronous>, transform_indices = @transform_3, window_bounds = array<i64: 4, 32>}, {pipeline_mode = #tpu.pipeline_mode<synchronous>, transform_indices = @transform_4, window_bounds = array<i64: 1, 32>}, {pipeline_mode = #tpu.pipeline_mode<synchronous>, transform_indices = @transform_5, window_bounds = array<i64: 32, 32>}, {pipeline_mode = #tpu.pipeline_mode<synchronous>, transform_indices = @transform_6, window_bounds = array<i64: 1, 32>}, {pipeline_mode = #tpu.pipeline_mode<synchronous>, transform_indices = @transform_7, window_bounds = array<i64: 32, 128>}, {pipeline_mode = #tpu.pipeline_mode<synchronous>, transform_indices = @transform_8, window_bounds = array<i64: 1, 128>}, {transform_indices = @transform_9, window_bounds = array<i64: 16, 128>}]} {
    %c0 = arith.constant 0 : index
    %c0_0 = arith.constant 0 : index
    %0 = vector.load %arg1[%c0, %c0_0] : memref<16x16xf32, #tpu.memory_space<vmem>>, vector<16x16xf32>
    %c0_1 = arith.constant 0 : index
    %c0_2 = arith.constant 0 : index
    %1 = vector.load %arg3[%c0_1, %c0_2] : memref<16x32xf32, #tpu.memory_space<vmem>>, vector<16x32xf32>
    %cst = arith.constant dense<0.000000e+00> : vector<16x32xf32>
    %2 = tpu.matmul %0, %1, %cst {dimension_numbers = #tpu.dot_dimension_numbers<[1], [0], [0], [1], [0, 0, 1, 1], [], []>} : vector<16x16xf32>, vector<16x32xf32>, vector<16x32xf32> -> vector<16x32xf32>
    %c0_3 = arith.constant 0 : index
    %c0_4 = arith.constant 0 : index
    %3 = vector.load %arg2[%c0_3, %c0_4] : memref<16x4xf32, #tpu.memory_space<vmem>>, vector<16x4xf32>
    %c0_5 = arith.constant 0 : index
    %c0_6 = arith.constant 0 : index
    %4 = vector.load %arg4[%c0_5, %c0_6] : memref<4x32xf32, #tpu.memory_space<vmem>>, vector<4x32xf32>
    %cst_7 = arith.constant dense<0.000000e+00> : vector<16x32xf32>
    %5 = tpu.matmul %3, %4, %cst_7 {dimension_numbers = #tpu.dot_dimension_numbers<[1], [0], [0], [1], [0, 0, 1, 1], [], []>} : vector<16x4xf32>, vector<4x32xf32>, vector<16x32xf32> -> vector<16x32xf32>
    %6 = arith.addf %2, %5 : vector<16x32xf32>
    %c0_8 = arith.constant 0 : index
    %c0_9 = arith.constant 0 : index
    %7 = vector.load %arg5[%c0_8, %c0_9] : memref<1x32xf32, #tpu.memory_space<vmem>>, vector<1x32xf32>
    %8 = vector.broadcast %7 : vector<1x32xf32> to vector<16x32xf32>
    %9 = arith.addf %6, %8 : vector<16x32xf32>
    %cst_10 = arith.constant 0.000000e+00 : f32
    %10 = vector.broadcast %cst_10 : f32 to vector<16x32xf32>
    %11 = arith.maximumf %9, %10 : vector<16x32xf32>
    %c0_11 = arith.constant 0 : index
    %c0_12 = arith.constant 0 : index
    %12 = vector.load %arg6[%c0_11, %c0_12] : memref<32x32xf32, #tpu.memory_space<vmem>>, vector<32x32xf32>
    %cst_13 = arith.constant dense<0.000000e+00> : vector<16x32xf32>
    %13 = tpu.matmul %11, %12, %cst_13 {dimension_numbers = #tpu.dot_dimension_numbers<[1], [0], [0], [1], [0, 0, 1, 1], [], []>} : vector<16x32xf32>, vector<32x32xf32>, vector<16x32xf32> -> vector<16x32xf32>
    %c0_14 = arith.constant 0 : index
    %c0_15 = arith.constant 0 : index
    %14 = vector.load %arg7[%c0_14, %c0_15] : memref<1x32xf32, #tpu.memory_space<vmem>>, vector<1x32xf32>
    %15 = vector.broadcast %14 : vector<1x32xf32> to vector<16x32xf32>
    %16 = arith.addf %13, %15 : vector<16x32xf32>
    %cst_16 = arith.constant 0.000000e+00 : f32
    %17 = vector.broadcast %cst_16 : f32 to vector<16x32xf32>
    %18 = arith.maximumf %16, %17 : vector<16x32xf32>
    %c0_17 = arith.constant 0 : index
    %c0_18 = arith.constant 0 : index
    %19 = vector.load %arg8[%c0_17, %c0_18] : memref<32x128xf32, #tpu.memory_space<vmem>>, vector<32x128xf32>
    %cst_19 = arith.constant dense<0.000000e+00> : vector<16x128xf32>
    %20 = tpu.matmul %18, %19, %cst_19 {dimension_numbers = #tpu.dot_dimension_numbers<[1], [0], [0], [1], [0, 0, 1, 1], [], []>} : vector<16x32xf32>, vector<32x128xf32>, vector<16x128xf32> -> vector<16x128xf32>
    %c0_20 = arith.constant 0 : index
    %c0_21 = arith.constant 0 : index
    %21 = vector.load %arg9[%c0_20, %c0_21] : memref<1x128xf32, #tpu.memory_space<vmem>>, vector<1x128xf32>
    %22 = vector.broadcast %21 : vector<1x128xf32> to vector<16x128xf32>
    %23 = arith.addf %20, %22 : vector<16x128xf32>
    %c0_22 = arith.constant 0 : index
    %c0_23 = arith.constant 0 : index
    %24 = vector.load %arg10[%c0_22, %c0_23] : memref<16x128xf32, #tpu.memory_space<vmem>>, vector<16x128xf32>
    tpu.vector_store %arg10[%c0_22, %c0_23], %23 {strides = array<i32>} : memref<16x128xf32, #tpu.memory_space<vmem>>, vector<16x128xf32>,
    return
  }
  func.func @transform_0(%arg0: i32) -> (i32, i32) {
    %c0_i32 = arith.constant 0 : i32
    %c0_i32_0 = arith.constant 0 : i32
    return %arg0, %c0_i32 : i32, i32
  }
  func.func @transform_1(%arg0: i32) -> (i32, i32) {
    %c0_i32 = arith.constant 0 : i32
    %c0_i32_0 = arith.constant 0 : i32
    return %arg0, %c0_i32 : i32, i32
  }
  func.func @transform_2(%arg0: i32) -> (i32, i32) {
    %c0_i32 = arith.constant 0 : i32
    %c0_i32_0 = arith.constant 0 : i32
    %c0_i32_1 = arith.constant 0 : i32
    return %c0_i32, %c0_i32_0 : i32, i32
  }
  func.func @transform_3(%arg0: i32) -> (i32, i32) {
    %c0_i32 = arith.constant 0 : i32
    %c0_i32_0 = arith.constant 0 : i32
    %c0_i32_1 = arith.constant 0 : i32
    return %c0_i32, %c0_i32_0 : i32, i32
  }
  func.func @transform_4(%arg0: i32) -> (i32, i32) {
    %c0_i32 = arith.constant 0 : i32
    %c0_i32_0 = arith.constant 0 : i32
    %c0_i32_1 = arith.constant 0 : i32
    return %c0_i32, %c0_i32_0 : i32, i32
  }
  func.func @transform_5(%arg0: i32) -> (i32, i32) {
    %c0_i32 = arith.constant 0 : i32
    %c0_i32_0 = arith.constant 0 : i32
    %c0_i32_1 = arith.constant 0 : i32
    return %c0_i32, %c0_i32_0 : i32, i32
  }
  func.func @transform_6(%arg0: i32) -> (i32, i32) {
    %c0_i32 = arith.constant 0 : i32
    %c0_i32_0 = arith.constant 0 : i32
    %c0_i32_1 = arith.constant 0 : i32
    return %c0_i32, %c0_i32_0 : i32, i32
  }
  func.func @transform_7(%arg0: i32) -> (i32, i32) {
    %c0_i32 = arith.constant 0 : i32
    %c0_i32_0 = arith.constant 0 : i32
    %c0_i32_1 = arith.constant 0 : i32
    return %c0_i32, %c0_i32_0 : i32, i32
  }
  func.func @transform_8(%arg0: i32) -> (i32, i32) {
    %c0_i32 = arith.constant 0 : i32
    %c0_i32_0 = arith.constant 0 : i32
    %c0_i32_1 = arith.constant 0 : i32
    return %c0_i32, %c0_i32_0 : i32, i32
  }
  func.func @transform_9(%arg0: i32) -> (i32, i32) {
    %c0_i32 = arith.constant 0 : i32
    %c0_i32_0 = arith.constant 0 : i32
    return %arg0, %c0_i32 : i32, i32
  }
}

</mosaic_0001>

<llo_original>
// kernel: tpu_custom_call.1
$region0: #{tpu_custom_call.1}
  #allocation0 [shape = 'u32[]', space=smem, size = 0x4, offset = 0x4, fixed_abs, tag = 'smem constant byte address 0x4 - core index']
  #allocation1 [shape = 'u32[144,128]{1,0:T(1,128)}', space=vmem, size = 0x12000, scoped, tag = 'internal scratch']
  %s0 = inlined_call_operand.vmem [shape: f32[64,16], index: 0, kind: input, shape index: {}]
  %s1 = inlined_call_operand.vmem [shape: f32[64,4], index: 1, kind: input, shape index: {}]
  %s2 = inlined_call_operand.vmem [shape: f32[16,32], index: 2, kind: input, shape index: {}]
  %s3 = inlined_call_operand.vmem [shape: f32[4,32], index: 3, kind: input, shape index: {}]
  %s4 = inlined_call_operand.vmem [shape: f32[1,32], index: 4, kind: input, shape index: {}]
  %s5 = inlined_call_operand.vmem [shape: f32[32,32], index: 5, kind: input, shape index: {}]
  %s6 = inlined_call_operand.vmem [shape: f32[1,32], index: 6, kind: input, shape index: {}]
  %s7 = inlined_call_operand.vmem [shape: f32[32,128], index: 7, kind: input, shape index: {}]
  %s8 = inlined_call_operand.vmem [shape: f32[1,128], index: 8, kind: input, shape index: {}]
  %s9 = inlined_call_operand.hbm [shape: f32[64,128], index: 9, kind: output, shape index: {}]
  %s10 = sld [smem:[#allocation0]]
  $region69: #{tpu_custom_call.1} parent=0
    _
  %s12 = ssub.s32 1, %s10
  %s13 = scalar_select 0, %s12, %s10
  $region1: #{tpu_custom_call.1} parent=0
    #allocation2 [shape = 'u8[16384]{0}', space=vmem, size = 0x4000, scoped, tag = 'output window, operand 0']
    #allocation3 [shape = 's32[2]{0}', space=sflag, size = 0x8, scoped, tag = 'scoped memory for tpu_custom_call.1']
    %14 = vsyncpa [#allocation3], 0
    %s15 = scalar_lea.sflag [#allocation3], 1
    %16 = vsyncpa %s15, 0
    loop: start=0, step=1, limit=6
    $region2: #{tpu_custom_call.1} parent=1 // loop_pre_header
      _
    $region3: #{tpu_custom_call.1} parent=1 // loop_header
      %s18 = sphi 0, %s22
      %p19 = scmp.ge.s32.totalorder %s18, 6
      %s28 = sphi 0, %s30
      %s31 = sphi 0, %s28
      %s32 = sphi 0, %s31
      %s48 = sphi 0, %s32
      %s54 = sphi 0, %s56
      %s57 = sphi 0, %s54
      %s58 = sphi 0, %s57
      %s74 = sphi 0, %s58
      %s78 = sphi 0, %s78
      %s80 = sphi 0, %s78
      %s81 = sphi 0, %s80
      %s95 = sphi 0, %s81
      %s99 = sphi 0, %s99
      %s101 = sphi 0, %s99
      %s102 = sphi 0, %s101
      %s116 = sphi 0, %s102
      %s120 = sphi 0, %s120
      %s122 = sphi 0, %s120
      %s123 = sphi 0, %s122
      %s137 = sphi 0, %s123
      %s141 = sphi 0, %s141
      %s143 = sphi 0, %s141
      %s144 = sphi 0, %s143
      %s158 = sphi 0, %s144
      %s162 = sphi 0, %s162
      %s164 = sphi 0, %s162
      %s165 = sphi 0, %s164
      %s179 = sphi 0, %s165
      %s183 = sphi 0, %s183
      %s185 = sphi 0, %s183
      %s186 = sphi 0, %s185
      %s200 = sphi 0, %s186
      %s204 = sphi 0, %s204
      %s206 = sphi 0, %s204
      %s207 = sphi 0, %s206
      %s221 = sphi 0, %s207
      %s227 = sphi 0, %s229
      %s230 = sphi 0, %s227
      %s231 = sphi 0, %s230
      %s247 = sphi 0, %s231
    $region4: #{tpu_custom_call.1} parent=1 // loop_header_branch
      %21 = sbr.rel (%p19) target = $region8
    $region5: #{tpu_custom_call.1} parent=1 // loop_body
      %s23 = ssub.s32 %s18, 1
      %s24 = ssub.s32 %s18, 2
      %s25 = sadd.s32 %s18, 1
      %s26 = ssub.s32 %s18, %s25
      %p27 = scmp.eq.s32.totalorder %s26, 0
      %s29 = sadd.s32 %s28, 1
      %s30 = scalar_select %p27, %s28, %s29
      %p33 = pneg %p27
      %p34 = scmp.eq.s32.totalorder %s18, 3
      %p35 = por %p33, %p34
      %p36 = scmp.ne.s32.totalorder %s28, %s31
      %p37 = scmp.eq.s32.totalorder %s18, 0
      %p38 = por %p36, %p37
      %p39 = scmp.ne.s32.totalorder %s28, %s31
      %p40 = scmp.eq.s32.totalorder %s23, 3
      %p41 = por %p39, %p40
      %p42 = scmp.ne.s32.totalorder %s31, %s32
      %p43 = scmp.eq.s32.totalorder %s23, 0
      %p44 = por %p42, %p43
      %p45 = scmp.ne.s32.totalorder %s31, %s32
      %p46 = scmp.eq.s32.totalorder %s24, 3
      %p47 = por %p45, %p46
      %p49 = scmp.ne.s32.totalorder %s32, %s48
      %p50 = scmp.eq.s32.totalorder %s24, 0
      %p51 = por %p49, %p50
      %s52 = ssub.s32 %s18, %s25
      %p53 = scmp.eq.s32.totalorder %s52, 0
      %s55 = sadd.s32 %s54, 1
      %s56 = scalar_select %p53, %s54, %s55
      %p59 = pneg %p53
      %p60 = scmp.eq.s32.totalorder %s18, 3
      %p61 = por %p59, %p60
      %p62 = scmp.ne.s32.totalorder %s54, %s57
      %p63 = scmp.eq.s32.totalorder %s18, 0
      %p64 = por %p62, %p63
      %p65 = scmp.ne.s32.totalorder %s54, %s57
      %p66 = scmp.eq.s32.totalorder %s23, 3
      %p67 = por %p65, %p66
      %p68 = scmp.ne.s32.totalorder %s57, %s58
      %p69 = scmp.eq.s32.totalorder %s23, 0
      %p70 = por %p68, %p69
      %p71 = scmp.ne.s32.totalorder %s57, %s58
      %p72 = scmp.eq.s32.totalorder %s24, 3
      %p73 = por %p71, %p72
      %p75 = scmp.ne.s32.totalorder %s58, %s74
      %p76 = scmp.eq.s32.totalorder %s24, 0
      %p77 = por %p75, %p76
      %s79 = sadd.s32 %s78, 1
      %p82 = scmp.eq.s32.totalorder %s18, 3
      %p83 = scmp.ne.s32.totalorder %s78, %s80
      %p84 = scmp.eq.s32.totalorder %s18, 0
      %p85 = por %p83, %p84
      %p86 = scmp.ne.s32.totalorder %s78, %s80
      %p87 = scmp.eq.s32.totalorder %s23, 3
      %p88 = por %p86, %p87
      %p89 = scmp.ne.s32.totalorder %s80, %s81
      %p90 = scmp.eq.s32.totalorder %s23, 0
      %p91 = por %p89, %p90
      %p92 = scmp.ne.s32.totalorder %s80, %s81
      %p93 = scmp.eq.s32.totalorder %s24, 3
      %p94 = por %p92, %p93
      %p96 = scmp.ne.s32.totalorder %s81, %s95
      %p97 = scmp.eq.s32.totalorder %s24, 0
      %p98 = por %p96, %p97
      %s100 = sadd.s32 %s99, 1
      %p103 = scmp.eq.s32.totalorder %s18, 3
      %p104 = scmp.ne.s32.totalorder %s99, %s101
      %p105 = scmp.eq.s32.totalorder %s18, 0
      %p106 = por %p104, %p105
      %p107 = scmp.ne.s32.totalorder %s99, %s101
      %p108 = scmp.eq.s32.totalorder %s23, 3
      %p109 = por %p107, %p108
      %p110 = scmp.ne.s32.totalorder %s101, %s102
      %p111 = scmp.eq.s32.totalorder %s23, 0
      %p112 = por %p110, %p111
      %p113 = scmp.ne.s32.totalorder %s101, %s102
      %p114 = scmp.eq.s32.totalorder %s24, 3
      %p115 = por %p113, %p114
      %p117 = scmp.ne.s32.totalorder %s102, %s116
      %p118 = scmp.eq.s32.totalorder %s24, 0
      %p119 = por %p117, %p118
      %s121 = sadd.s32 %s120, 1
      %p124 = scmp.eq.s32.totalorder %s18, 3
      %p125 = scmp.ne.s32.totalorder %s120, %s122
      %p126 = scmp.eq.s32.totalorder %s18, 0
      %p127 = por %p125, %p126
      %p128 = scmp.ne.s32.totalorder %s120, %s122
      %p129 = scmp.eq.s32.totalorder %s23, 3
      %p130 = por %p128, %p129
      %p131 = scmp.ne.s32.totalorder %s122, %s123
      %p132 = scmp.eq.s32.totalorder %s23, 0
      %p133 = por %p131, %p132
      %p134 = scmp.ne.s32.totalorder %s122, %s123
      %p135 = scmp.eq.s32.totalorder %s24, 3
      %p136 = por %p134, %p135
      %p138 = scmp.ne.s32.totalorder %s123, %s137
      %p139 = scmp.eq.s32.totalorder %s24, 0
      %p140 = por %p138, %p139
      %s142 = sadd.s32 %s141, 1
      %p145 = scmp.eq.s32.totalorder %s18, 3
      %p146 = scmp.ne.s32.totalorder %s141, %s143
      %p147 = scmp.eq.s32.totalorder %s18, 0
      %p148 = por %p146, %p147
      %p149 = scmp.ne.s32.totalorder %s141, %s143
      %p150 = scmp.eq.s32.totalorder %s23, 3
      %p151 = por %p149, %p150
      %p152 = scmp.ne.s32.totalorder %s143, %s144
      %p153 = scmp.eq.s32.totalorder %s23, 0
      %p154 = por %p152, %p153
      %p155 = scmp.ne.s32.totalorder %s143, %s144
      %p156 = scmp.eq.s32.totalorder %s24, 3
      %p157 = por %p155, %p156
      %p159 = scmp.ne.s32.totalorder %s144, %s158
      %p160 = scmp.eq.s32.totalorder %s24, 0
      %p161 = por %p159, %p160
      %s163 = sadd.s32 %s162, 1
      %p166 = scmp.eq.s32.totalorder %s18, 3
      %p167 = scmp.ne.s32.totalorder %s162, %s164
      %p168 = scmp.eq.s32.totalorder %s18, 0
      %p169 = por %p167, %p168
      %p170 = scmp.ne.s32.totalorder %s162, %s164
      %p171 = scmp.eq.s32.totalorder %s23, 3
      %p172 = por %p170, %p171
      %p173 = scmp.ne.s32.totalorder %s164, %s165
      %p174 = scmp.eq.s32.totalorder %s23, 0
      %p175 = por %p173, %p174
      %p176 = scmp.ne.s32.totalorder %s164, %s165
      %p177 = scmp.eq.s32.totalorder %s24, 3
      %p178 = por %p176, %p177
      %p180 = scmp.ne.s32.totalorder %s165, %s179
      %p181 = scmp.eq.s32.totalorder %s24, 0
      %p182 = por %p180, %p181
      %s184 = sadd.s32 %s183, 1
      %p187 = scmp.eq.s32.totalorder %s18, 3
      %p188 = scmp.ne.s32.totalorder %s183, %s185
      %p189 = scmp.eq.s32.totalorder %s18, 0
      %p190 = por %p188, %p189
      %p191 = scmp.ne.s32.totalorder %s183, %s185
      %p192 = scmp.eq.s32.totalorder %s23, 3
      %p193 = por %p191, %p192
      %p194 = scmp.ne.s32.totalorder %s185, %s186
      %p195 = scmp.eq.s32.totalorder %s23, 0
      %p196 = por %p194, %p195
      %p197 = scmp.ne.s32.totalorder %s185, %s186
      %p198 = scmp.eq.s32.totalorder %s24, 3
      %p199 = por %p197, %p198
      %p201 = scmp.ne.s32.totalorder %s186, %s200
      %p202 = scmp.eq.s32.totalorder %s24, 0
      %p203 = por %p201, %p202
      %s205 = sadd.s32 %s204, 1
      %p208 = scmp.eq.s32.totalorder %s18, 3
      %p209 = scmp.ne.s32.totalorder %s204, %s206
      %p210 = scmp.eq.s32.totalorder %s18, 0
      %p211 = por %p209, %p210
      %p212 = scmp.ne.s32.totalorder %s204, %s206
      %p213 = scmp.eq.s32.totalorder %s23, 3
      %p214 = por %p212, %p213
      %p215 = scmp.ne.s32.totalorder %s206, %s207
      %p216 = scmp.eq.s32.totalorder %s23, 0
      %p217 = por %p215, %p216
      %p218 = scmp.ne.s32.totalorder %s206, %s207
      %p219 = scmp.eq.s32.totalorder %s24, 3
      %p220 = por %p218, %p219
      %p222 = scmp.ne.s32.totalorder %s207, %s221
      %p223 = scmp.eq.s32.totalorder %s24, 0
      %p224 = por %p222, %p223
      %s225 = ssub.s32 %s18, %s25
      %p226 = scmp.eq.s32.totalorder %s225, 0
      %s228 = sadd.s32 %s227, 1
      %s229 = scalar_select %p226, %s227, %s228
      %p232 = pneg %p226
      %p233 = scmp.eq.s32.totalorder %s18, 3
      %p234 = por %p232, %p233
      %p235 = scmp.ne.s32.totalorder %s227, %s230
      %p236 = scmp.eq.s32.totalorder %s18, 0
      %p237 = por %p235, %p236
      %p238 = scmp.ne.s32.totalorder %s227, %s230
      %p239 = scmp.eq.s32.totalorder %s23, 3
      %p240 = por %p238, %p239
      %p241 = scmp.ne.s32.totalorder %s230, %s231
      %p242 = scmp.eq.s32.totalorder %s23, 0
      %p243 = por %p241, %p242
      %p244 = scmp.ne.s32.totalorder %s230, %s231
      %p245 = scmp.eq.s32.totalorder %s24, 3
      %p246 = por %p244, %p245
      %p248 = scmp.ne.s32.totalorder %s231, %s247
      %p249 = scmp.eq.s32.totalorder %s24, 0
      %p250 = por %p248, %p249
      %p251 = scmp.le.s32.totalorder 1, %s18
      %p252 = scmp.lt.s32.totalorder %s18, 5
      %p253 = pnand %p251, %p252
      %p254 = pneg %p253
      // Predicated region
      $region9: #{tpu_custom_call.1} parent=5 // pred_check
        _
      $region10: #{tpu_custom_call.1} parent=5 // pred_check_branch
        %256 = sbr.rel (%p253) target = $region12
      $region11: #{tpu_custom_call.1} parent=5 // pred_region
        %s257 = ssub.s32 %s18, 1
        // Predicated region
        $region13: #{tpu_custom_call.1} parent=11 // pred_check
          %p258 = pneg %p91
        $region14: #{tpu_custom_call.1} parent=11 // pred_check_branch
          %260 = sbr.rel (%p258) target = $region16
        $region15: #{tpu_custom_call.1} parent=11 // pred_region
          _
        $region16: #{tpu_custom_call.1} parent=11 // pred_fallthru
          _
        // Predicated region
        $region17: #{tpu_custom_call.1} parent=11 // pred_check
          %p261 = pneg %p112
        $region18: #{tpu_custom_call.1} parent=11 // pred_check_branch
          %263 = sbr.rel (%p261) target = $region20
        $region19: #{tpu_custom_call.1} parent=11 // pred_region
          _
        $region20: #{tpu_custom_call.1} parent=11 // pred_fallthru
          _
        // Predicated region
        $region21: #{tpu_custom_call.1} parent=11 // pred_check
          %p264 = pneg %p133
        $region22: #{tpu_custom_call.1} parent=11 // pred_check_branch
          %266 = sbr.rel (%p264) target = $region24
        $region23: #{tpu_custom_call.1} parent=11 // pred_region
          _
        $region24: #{tpu_custom_call.1} parent=11 // pred_fallthru
          _
        // Predicated region
        $region25: #{tpu_custom_call.1} parent=11 // pred_check
          %p267 = pneg %p154
        $region26: #{tpu_custom_call.1} parent=11 // pred_check_branch
          %269 = sbr.rel (%p267) target = $region28
        $region27: #{tpu_custom_call.1} parent=11 // pred_region
          _
        $region28: #{tpu_custom_call.1} parent=11 // pred_fallthru
          _
        // Predicated region
        $region29: #{tpu_custom_call.1} parent=11 // pred_check
          %p270 = pneg %p175
        $region30: #{tpu_custom_call.1} parent=11 // pred_check_branch
          %272 = sbr.rel (%p270) target = $region32
        $region31: #{tpu_custom_call.1} parent=11 // pred_region
          _
        $region32: #{tpu_custom_call.1} parent=11 // pred_fallthru
          _
        // Predicated region
        $region33: #{tpu_custom_call.1} parent=11 // pred_check
          %p273 = pneg %p196
        $region34: #{tpu_custom_call.1} parent=11 // pred_check_branch
          %275 = sbr.rel (%p273) target = $region36
        $region35: #{tpu_custom_call.1} parent=11 // pred_region
          _
        $region36: #{tpu_custom_call.1} parent=11 // pred_fallthru
          _
        // Predicated region
        $region37: #{tpu_custom_call.1} parent=11 // pred_check
          %p276 = pneg %p217
        $region38: #{tpu_custom_call.1} parent=11 // pred_check_branch
          %278 = sbr.rel (%p276) target = $region40
        $region39: #{tpu_custom_call.1} parent=11 // pred_region
          _
        $region40: #{tpu_custom_call.1} parent=11 // pred_fallthru
          _
      $region12: #{tpu_custom_call.1} parent=5 // pred_fallthru
        _
      %p279 = scmp.lt.s32.totalorder %s18, 4
      // Predicated region
      $region41: #{tpu_custom_call.1} parent=5 // pred_check
        %p280 = pneg %p279
      $region42: #{tpu_custom_call.1} parent=5 // pred_check_branch
        %282 = sbr.rel (%p280) target = $region44
      $region43: #{tpu_custom_call.1} parent=5 // pred_region
        // Predicated region
        $region45: #{tpu_custom_call.1} parent=43 // pred_check
          %p283 = pneg %p38
        $region46: #{tpu_custom_call.1} parent=43 // pred_check_branch
          %285 = sbr.rel (%p283) target = $region48
        $region47: #{tpu_custom_call.1} parent=43 // pred_region
          %s286 = smul.u32 2, %s18
          %p287 = scmp.lt.s32.totalorder %s286, 7
          %s288 = scalar_select %p287, %s286, 7
          %s289 = smul.addr %s288, 8
          %s290 = scalar_lea.vmem %s0, %s289
          %s291 = smul.u32 2, %s18
        $region48: #{tpu_custom_call.1} parent=43 // pred_fallthru
          _
        // Predicated region
        $region49: #{tpu_custom_call.1} parent=43 // pred_check
          %p292 = pneg %p64
        $region50: #{tpu_custom_call.1} parent=43 // pred_check_branch
          %294 = sbr.rel (%p292) target = $region52
        $region51: #{tpu_custom_call.1} parent=43 // pred_region
          %s295 = smul.u32 2, %s18
          %p296 = scmp.lt.s32.totalorder %s295, 7
          %s297 = scalar_select %p296, %s295, 7
          %s298 = smul.addr %s297, 8
          %s299 = scalar_lea.vmem %s1, %s298
          %s300 = smul.u32 2, %s18
        $region52: #{tpu_custom_call.1} parent=43 // pred_fallthru
          _
      $region44: #{tpu_custom_call.1} parent=5 // pred_fallthru
        _
      %p301 = scmp.le.s32.totalorder 1, %s18
      %p302 = scmp.lt.s32.totalorder %s18, 5
      %p303 = pnand %p301, %p302
      %p304 = pneg %p303
      // Predicated region
      $region53: #{tpu_custom_call.1} parent=5 // pred_check
        _
      $region54: #{tpu_custom_call.1} parent=5 // pred_check_branch
        %306 = sbr.rel (%p303) target = $region56
      $region55: #{tpu_custom_call.1} parent=5 // pred_region
        %s307 = ssub.s32 %s18, 1
        %s308 = smul.u32 2, %s23
        %p309 = scmp.lt.s32.totalorder %s308, 7
        %s310 = scalar_select %p309, %s308, 7
        %s311 = smul.addr %s310, 8
        %s312 = scalar_lea.vmem %s0, %s311
        %p313 = pneg %p44
        %p314 = pneg %p41
        %s315 = smul.u32 2, %s23
        %p316 = scmp.lt.s32.totalorder %s315, 7
        %s317 = scalar_select %p316, %s315, 7
        %s318 = smul.addr %s317, 8
        %s319 = scalar_lea.vmem %s1, %s318
        %p320 = pneg %p70
        %p321 = pneg %p67
        %p322 = pneg %p91
        %p323 = pneg %p88
        %p324 = pneg %p112
        %p325 = pneg %p109
        %p326 = pneg %p133
        %p327 = pneg %p130
        %p328 = pneg %p154
        %p329 = pneg %p151
        %p330 = pneg %p175
        %p331 = pneg %p172
        %p332 = pneg %p196
        %p333 = pneg %p193
        %p334 = pneg %p217
        %p335 = pneg %p214
        %p336 = pneg %p243
        %p337 = pneg %p240
        %s338 = sand.u32 %s230, 1
        %s339 = scalar_lea.sflag [#allocation3], %s338
        %s340 = sand.u32 %s230, 1
        %s341 = smul.addr %s340, 16
        %s342 = scalar_lea.vmem [#allocation2], %s341
        %s343 = smul.u32 2, %s23
        %p344 = scmp.lt.s32.totalorder %s343, 7
        %s345 = scalar_select %p344, %s343, 7
        %s346 = smul.addr %s345, 8
        %s347 = scalar_lea.vmem %s0, %s346
        %s348 = smul.u32 2, %s23
        %s349 = smul.u32 2, %s23
        %p350 = scmp.lt.s32.totalorder %s349, 7
        %s351 = scalar_select %p350, %s349, 7
        %s352 = smul.addr %s351, 8
        %s353 = scalar_lea.vmem %s1, %s352
        %s354 = smul.u32 2, %s23
        %s355 = smul.u32 2, %s23
        %v356 = vld [vmem:[%s347] sm:$0xff]
        %v357 = vld [vmem:[%s347 + $0x8] sm:$0xff]
        %v358 = vld [vmem:[%s2] sm:$0xff]
        %v359 = vld [vmem:[%s2 + $0x8] sm:$0xff]
        %v360 = vld [vmem:[%s353] sm:$0xff]
        %v361 = vld [vmem:[%s353 + $0x8] sm:$0xff]
        %v362 = vld [vmem:[%s3] sm:$0xf]
        %vm363 = vcmask 31744
        %v365 = vsel %vm363, %v360, 0
        %v368 = vsel %vm363, %v361, 0
        %vm370 = vcmask 1043456
        %v372 = vsel %vm370, %v362, 0
        %374 = vmatprep.subr.mxu0 0.0
        %375 = vmatpush1.msra.mxu0 %v372
        %376 = vmatprep.subr.mxu0 0.0
        %377 = vmatpush1.msra.mxu0 0.0
        %378 = vmatprep.subr.mxu0 0.0
        %379 = vmatpush1.msra.mxu0 0.0
        %380 = vmatprep.subr.mxu0 0.0
        %381 = vmatpush1.msra.mxu0 0.0
        %382 = vmatprep.subr.mxu0 0.0
        %383 = vmatpush1.msra.mxu0 0.0
        %384 = vmatprep.subr.mxu0 0.0
        %385 = vmatpush1.msra.mxu0 0.0
        %386 = vmatprep.subr.mxu0 0.0
        %387 = vmatpush1.msra.mxu0 0.0
        %388 = vmatprep.subr.mxu0 0.0
        %389 = vmatpush1.msra.mxu0 0.0
        %390 = vmatprep.subr.mxu0 0.0
        %391 = vmatpush1.msra.mxu0 0.0
        %392 = vmatprep.subr.mxu0 0.0
        %393 = vmatpush1.msra.mxu0 0.0
        %394 = vmatprep.subr.mxu0 0.0
        %395 = vmatpush1.msra.mxu0 0.0
        %396 = vmatprep.subr.mxu0 0.0
        %397 = vmatpush1.msra.mxu0 0.0
        %398 = vmatprep.subr.mxu0 0.0
        %399 = vmatpush1.msra.mxu0 0.0
        %400 = vmatprep.subr.mxu0 0.0
        %401 = vmatpush1.msra.mxu0 0.0
        %402 = vmatprep.subr.mxu0 0.0
        %403 = vmatpush1.msra.mxu0 0.0
        %404 = vmatprep.subr.mxu0 0.0
        %405 = vmatpush1.msra.mxu0 0.0
        %406 = vmatprep.subr.mxu0 0.0
        %407 = vmatpush1.msra.mxu0 0.0
        %408 = vmatprep.subr.mxu0 0.0
        %409 = vmatpush1.msra.mxu0 0.0
        %410 = vmatprep.subr.mxu0 0.0
        %411 = vmatpush1.msra.mxu0 0.0
        %412 = vmatprep.subr.mxu0 0.0
        %413 = vmatpush1.msra.mxu0 0.0
        %414 = vmatprep.subr.mxu0 0.0
        %415 = vmatpush1.msra.mxu0 0.0
        %416 = vmatprep.subr.mxu0 0.0
        %417 = vmatpush1.msra.mxu0 0.0
        %418 = vmatprep.subr.mxu0 0.0
        %419 = vmatpush1.msra.mxu0 0.0
        %420 = vmatprep.subr.mxu0 0.0
        %421 = vmatpush1.msra.mxu0 0.0
        %422 = vmatprep.subr.mxu0 0.0
        %423 = vmatpush1.msra.mxu0 0.0
        %424 = vmatprep.subr.mxu0 0.0
        %425 = vmatpush1.msra.mxu0 0.0
        %426 = vmatprep.subr.mxu0 0.0
        %427 = vmatpush1.msra.mxu0 0.0
        %428 = vmatprep.subr.mxu0 0.0
        %429 = vmatpush1.msra.mxu0 0.0
        %430 = vmatprep.subr.mxu0 0.0
        %431 = vmatpush1.msra.mxu0 0.0
        %432 = vmatprep.subr.mxu0 0.0
        %433 = vmatpush1.msra.mxu0 0.0
        %434 = vmatprep.subr.mxu0 0.0
        %435 = vmatpush1.msra.mxu0 0.0
        %436 = vmatprep.subr.mxu0 0.0
        %437 = vmatpush1.msra.mxu0 0.0
        %438 = vmatprep.mubr.f32.mxu0 0.0
        %439 = vmatmul.mubr.f32.gmra.mrb[0].mxu0 %v365
        %v440 = vpop.f32.mrb[0].mxu0
        %v441 = vadd.f32 0.0, %v440
        %v442 = vpop.f32.mrb[0].mxu0
        %443 = vmatprep.mubr.f32.mxu0 0.0
        %444 = vmatmul.mubr.f32.gmra.mrb[0].mxu0 %v368
        %v445 = vpop.f32.mrb[0].mxu0
        %v446 = vadd.f32 0.0, %v445
        %v447 = vpop.f32.mrb[0].mxu0
        %448 = vdwg.mxu0
        %vm449 = vcmask 130048
        %v451 = vsel %vm449, %v356, 0
        %v454 = vsel %vm449, %v357, 0
        %456 = vmatprep.subr.mxu0 0.0
        %457 = vmatpush1.msra.mxu0 %v358
        %458 = vmatprep.subr.mxu0 0.0
        %459 = vmatpush1.msra.mxu0 %v359
        %460 = vmatprep.subr.mxu0 0.0
        %461 = vmatpush1.msra.mxu0 0.0
        %462 = vmatprep.subr.mxu0 0.0
        %463 = vmatpush1.msra.mxu0 0.0
        %464 = vmatprep.subr.mxu0 0.0
        %465 = vmatpush1.msra.mxu0 0.0
        %466 = vmatprep.subr.mxu0 0.0
        %467 = vmatpush1.msra.mxu0 0.0
        %468 = vmatprep.subr.mxu0 0.0
        %469 = vmatpush1.msra.mxu0 0.0
        %470 = vmatprep.subr.mxu0 0.0
        %471 = vmatpush1.msra.mxu0 0.0
        %472 = vmatprep.subr.mxu0 0.0
        %473 = vmatpush1.msra.mxu0 0.0
        %474 = vmatprep.subr.mxu0 0.0
        %475 = vmatpush1.msra.mxu0 0.0
        %476 = vmatprep.subr.mxu0 0.0
        %477 = vmatpush1.msra.mxu0 0.0
        %478 = vmatprep.subr.mxu0 0.0
        %479 = vmatpush1.msra.mxu0 0.0
        %480 = vmatprep.subr.mxu0 0.0
        %481 = vmatpush1.msra.mxu0 0.0
        %482 = vmatprep.subr.mxu0 0.0
        %483 = vmatpush1.msra.mxu0 0.0
        %484 = vmatprep.subr.mxu0 0.0
        %485 = vmatpush1.msra.mxu0 0.0
        %486 = vmatprep.subr.mxu0 0.0
        %487 = vmatpush1.msra.mxu0 0.0
        %488 = vmatprep.subr.mxu0 0.0
        %489 = vmatpush1.msra.mxu0 0.0
        %490 = vmatprep.subr.mxu0 0.0
        %491 = vmatpush1.msra.mxu0 0.0
        %492 = vmatprep.subr.mxu0 0.0
        %493 = vmatpush1.msra.mxu0 0.0
        %494 = vmatprep.subr.mxu0 0.0
        %495 = vmatpush1.msra.mxu0 0.0
        %496 = vmatprep.subr.mxu0 0.0
        %497 = vmatpush1.msra.mxu0 0.0
        %498 = vmatprep.subr.mxu0 0.0
        %499 = vmatpush1.msra.mxu0 0.0
        %500 = vmatprep.subr.mxu0 0.0
        %501 = vmatpush1.msra.mxu0 0.0
        %502 = vmatprep.subr.mxu0 0.0
        %503 = vmatpush1.msra.mxu0 0.0
        %504 = vmatprep.subr.mxu0 0.0
        %505 = vmatpush1.msra.mxu0 0.0
        %506 = vmatprep.subr.mxu0 0.0
        %507 = vmatpush1.msra.mxu0 0.0
        %508 = vmatprep.subr.mxu0 0.0
        %509 = vmatpush1.msra.mxu0 0.0
        %510 = vmatprep.subr.mxu0 0.0
        %511 = vmatpush1.msra.mxu0 0.0
        %512 = vmatprep.subr.mxu0 0.0
        %513 = vmatpush1.msra.mxu0 0.0
        %514 = vmatprep.subr.mxu0 0.0
        %515 = vmatpush1.msra.mxu0 0.0
        %516 = vmatprep.subr.mxu0 0.0
        %517 = vmatpush1.msra.mxu0 0.0
        %518 = vmatprep.subr.mxu0 0.0
        %519 = vmatpush1.msra.mxu0 0.0
        %520 = vmatprep.mubr.f32.mxu0 0.0
        %521 = vmatmul.mubr.f32.gmra.mrb[0].mxu0 %v451
        %v522 = vpop.f32.mrb[0].mxu0
        %v523 = vadd.f32 %v441, %v522
        %v524 = vpop.f32.mrb[0].mxu0
        %525 = vmatprep.mubr.f32.mxu0 0.0
        %526 = vmatmul.mubr.f32.gmra.mrb[0].mxu0 %v454
        %v527 = vpop.f32.mrb[0].mxu0
        %v528 = vadd.f32 %v446, %v527
        %v529 = vpop.f32.mrb[0].mxu0
        %530 = vdwg.mxu0
        %v531 = vld [vmem:[%s4] sm:$0x1]
        %v533 = vlaneseq
        %v534 = vshrl.u32 %v533, 7
        %v535 = vsub.s32 0, %v534
        %v536 = vrot.slane %v531, %v535
        %v538 = vadd.f32 %v523, %v536
        %v539 = vadd.f32 %v528, %v536
        %v540 = vmax.f32 %v538, 0.0
        %v541 = vmax.f32 %v539, 0.0
        %v542 = vld [vmem:[%s5] sm:$0xff]
        %v543 = vld [vmem:[%s5 + $0x8] sm:$0xff]
        %v544 = vld [vmem:[%s5 + $0x10] sm:$0xff]
        %v545 = vld [vmem:[%s5 + $0x18] sm:$0xff]
        %v546 = vld [vmem:[%s6] sm:$0x1]
        %v548 = vlaneseq
        %v549 = vshrl.u32 %v548, 7
        %v550 = vsub.s32 0, %v549
        %v551 = vrot.slane %v546, %v550
        %vm553 = vcmask 261120
        %v555 = vsel %vm553, %v540, 0
        %v558 = vsel %vm553, %v541, 0
        %560 = vmatprep.subr.mxu0 0.0
        %561 = vmatpush1.msra.mxu0 %v542
        %562 = vmatprep.subr.mxu0 0.0
        %563 = vmatpush1.msra.mxu0 %v543
        %564 = vmatprep.subr.mxu0 0.0
        %565 = vmatpush1.msra.mxu0 %v544
        %566 = vmatprep.subr.mxu0 0.0
        %567 = vmatpush1.msra.mxu0 %v545
        %568 = vmatprep.subr.mxu0 0.0
        %569 = vmatpush1.msra.mxu0 0.0
        %570 = vmatprep.subr.mxu0 0.0
        %571 = vmatpush1.msra.mxu0 0.0
        %572 = vmatprep.subr.mxu0 0.0
        %573 = vmatpush1.msra.mxu0 0.0
        %574 = vmatprep.subr.mxu0 0.0
        %575 = vmatpush1.msra.mxu0 0.0
        %576 = vmatprep.subr.mxu0 0.0
        %577 = vmatpush1.msra.mxu0 0.0
        %578 = vmatprep.subr.mxu0 0.0
        %579 = vmatpush1.msra.mxu0 0.0
        %580 = vmatprep.subr.mxu0 0.0
        %581 = vmatpush1.msra.mxu0 0.0
        %582 = vmatprep.subr.mxu0 0.0
        %583 = vmatpush1.msra.mxu0 0.0
        %584 = vmatprep.subr.mxu0 0.0
        %585 = vmatpush1.msra.mxu0 0.0
        %586 = vmatprep.subr.mxu0 0.0
        %587 = vmatpush1.msra.mxu0 0.0
        %588 = vmatprep.subr.mxu0 0.0
        %589 = vmatpush1.msra.mxu0 0.0
        %590 = vmatprep.subr.mxu0 0.0
        %591 = vmatpush1.msra.mxu0 0.0
        %592 = vmatprep.subr.mxu0 0.0
        %593 = vmatpush1.msra.mxu0 0.0
        %594 = vmatprep.subr.mxu0 0.0
        %595 = vmatpush1.msra.mxu0 0.0
        %596 = vmatprep.subr.mxu0 0.0
        %597 = vmatpush1.msra.mxu0 0.0
        %598 = vmatprep.subr.mxu0 0.0
        %599 = vmatpush1.msra.mxu0 0.0
        %600 = vmatprep.subr.mxu0 0.0
        %601 = vmatpush1.msra.mxu0 0.0
        %602 = vmatprep.subr.mxu0 0.0
        %603 = vmatpush1.msra.mxu0 0.0
        %604 = vmatprep.subr.mxu0 0.0
        %605 = vmatpush1.msra.mxu0 0.0
        %606 = vmatprep.subr.mxu0 0.0
        %607 = vmatpush1.msra.mxu0 0.0
        %608 = vmatprep.subr.mxu0 0.0
        %609 = vmatpush1.msra.mxu0 0.0
        %610 = vmatprep.subr.mxu0 0.0
        %611 = vmatpush1.msra.mxu0 0.0
        %612 = vmatprep.subr.mxu0 0.0
        %613 = vmatpush1.msra.mxu0 0.0
        %614 = vmatprep.subr.mxu0 0.0
        %615 = vmatpush1.msra.mxu0 0.0
        %616 = vmatprep.subr.mxu0 0.0
        %617 = vmatpush1.msra.mxu0 0.0
        %618 = vmatprep.subr.mxu0 0.0
        %619 = vmatpush1.msra.mxu0 0.0
        %620 = vmatprep.subr.mxu0 0.0
        %621 = vmatpush1.msra.mxu0 0.0
        %622 = vmatprep.subr.mxu0 0.0
        %623 = vmatpush1.msra.mxu0 0.0
        %624 = vmatprep.mubr.f32.mxu0 0.0
        %625 = vmatmul.mubr.f32.gmra.mrb[0].mxu0 %v555
        %v626 = vpop.f32.mrb[0].mxu0
        %v627 = vadd.f32 %v551, %v626
        %v628 = vpop.f32.mrb[0].mxu0
        %629 = vmatprep.mubr.f32.mxu0 0.0
        %630 = vmatmul.mubr.f32.gmra.mrb[0].mxu0 %v558
        %v631 = vpop.f32.mrb[0].mxu0
        %v632 = vadd.f32 %v551, %v631
        %v633 = vpop.f32.mrb[0].mxu0
        %634 = vdwg.mxu0
        %v635 = vmax.f32 %v627, 0.0
        %v636 = vmax.f32 %v632, 0.0
        %v637 = vld [vmem:[%s7] sm:$0xff]
        %v638 = vld [vmem:[%s7 + $0x8] sm:$0xff]
        %v639 = vld [vmem:[%s7 + $0x10] sm:$0xff]
        %v640 = vld [vmem:[%s7 + $0x18] sm:$0xff]
        %v641 = vld [vmem:[%s8] sm:$0x1]
        %v643 = vlaneseq
        %v644 = vshrl.u32 %v643, 7
        %v645 = vsub.s32 0, %v644
        %v646 = vrot.slane %v641, %v645
        %v649 = vsel %vm553, %v635, 0
        %v652 = vsel %vm553, %v636, 0
        %654 = vmatprep.subr.mxu0 0.0
        %655 = vmatpush1.msra.mxu0 %v637
        %656 = vmatprep.subr.mxu0 0.0
        %657 = vmatpush1.msra.mxu0 %v638
        %658 = vmatprep.subr.mxu0 0.0
        %659 = vmatpush1.msra.mxu0 %v639
        %660 = vmatprep.subr.mxu0 0.0
        %661 = vmatpush1.msra.mxu0 %v640
        %662 = vmatprep.subr.mxu0 0.0
        %663 = vmatpush1.msra.mxu0 0.0
        %664 = vmatprep.subr.mxu0 0.0
        %665 = vmatpush1.msra.mxu0 0.0
        %666 = vmatprep.subr.mxu0 0.0
        %667 = vmatpush1.msra.mxu0 0.0
        %668 = vmatprep.subr.mxu0 0.0
        %669 = vmatpush1.msra.mxu0 0.0
        %670 = vmatprep.subr.mxu0 0.0
        %671 = vmatpush1.msra.mxu0 0.0
        %672 = vmatprep.subr.mxu0 0.0
        %673 = vmatpush1.msra.mxu0 0.0
        %674 = vmatprep.subr.mxu0 0.0
        %675 = vmatpush1.msra.mxu0 0.0
        %676 = vmatprep.subr.mxu0 0.0
        %677 = vmatpush1.msra.mxu0 0.0
        %678 = vmatprep.subr.mxu0 0.0
        %679 = vmatpush1.msra.mxu0 0.0
        %680 = vmatprep.subr.mxu0 0.0
        %681 = vmatpush1.msra.mxu0 0.0
        %682 = vmatprep.subr.mxu0 0.0
        %683 = vmatpush1.msra.mxu0 0.0
        %684 = vmatprep.subr.mxu0 0.0
        %685 = vmatpush1.msra.mxu0 0.0
        %686 = vmatprep.subr.mxu0 0.0
        %687 = vmatpush1.msra.mxu0 0.0
        %688 = vmatprep.subr.mxu0 0.0
        %689 = vmatpush1.msra.mxu0 0.0
        %690 = vmatprep.subr.mxu0 0.0
        %691 = vmatpush1.msra.mxu0 0.0
        %692 = vmatprep.subr.mxu0 0.0
        %693 = vmatpush1.msra.mxu0 0.0
        %694 = vmatprep.subr.mxu0 0.0
        %695 = vmatpush1.msra.mxu0 0.0
        %696 = vmatprep.subr.mxu0 0.0
        %697 = vmatpush1.msra.mxu0 0.0
        %698 = vmatprep.subr.mxu0 0.0
        %699 = vmatpush1.msra.mxu0 0.0
        %700 = vmatprep.subr.mxu0 0.0
        %701 = vmatpush1.msra.mxu0 0.0
        %702 = vmatprep.subr.mxu0 0.0
        %703 = vmatpush1.msra.mxu0 0.0
        %704 = vmatprep.subr.mxu0 0.0
        %705 = vmatpush1.msra.mxu0 0.0
        %706 = vmatprep.subr.mxu0 0.0
        %707 = vmatpush1.msra.mxu0 0.0
        %708 = vmatprep.subr.mxu0 0.0
        %709 = vmatpush1.msra.mxu0 0.0
        %710 = vmatprep.subr.mxu0 0.0
        %711 = vmatpush1.msra.mxu0 0.0
        %712 = vmatprep.subr.mxu0 0.0
        %713 = vmatpush1.msra.mxu0 0.0
        %714 = vmatprep.subr.mxu0 0.0
        %715 = vmatpush1.msra.mxu0 0.0
        %716 = vmatprep.subr.mxu0 0.0
        %717 = vmatpush1.msra.mxu0 0.0
        %718 = vmatprep.mubr.f32.mxu0 0.0
        %719 = vmatmul.mubr.f32.gmra.mrb[0].mxu0 %v649
        %v720 = vpop.f32.mrb[0].mxu0
        %v721 = vadd.f32 %v646, %v720
        %v722 = vpop.f32.mrb[0].mxu0
        %723 = vmatprep.mubr.f32.mxu0 0.0
        %724 = vmatmul.mubr.f32.gmra.mrb[0].mxu0 %v652
        %v725 = vpop.f32.mrb[0].mxu0
        %v726 = vadd.f32 %v646, %v725
        %v727 = vpop.f32.mrb[0].mxu0
        %728 = vdwg.mxu0
        %729 = vst [vmem:[%s342] sm:$0xff] %v721
        %730 = vst [vmem:[%s342 + $0x8] sm:$0xff] %v726
        %s731 = sand.u32 %s230, 1
        %s732 = scalar_lea.sflag [#allocation3], %s731
        %s733 = sand.u32 %s230, 1
        %s734 = smul.addr %s733, 16
        %s735 = scalar_lea.vmem [#allocation2], %s734
        // Predicated region
        $region57: #{tpu_custom_call.1} parent=55 // pred_check
          %p736 = pneg %p240
        $region58: #{tpu_custom_call.1} parent=55 // pred_check_branch
          %738 = sbr.rel (%p736) target = $region60
        $region59: #{tpu_custom_call.1} parent=55 // pred_region
          %s739 = smul.u32 2, %s23
          %s741 = ssub.s32 256, 256
          %742 = vsyncadd %s732, %s741
          %s743 = smul.addr %s739, 128
          %s744 = scalar_lea.hbm %s9, %s743
          %s745 = sshll.u32 %s735, 4
          %s746 = int_to_ptr.vmem [resolvable:$true] %s745
          %751 = dma.vmem_to_hbm [thread:$0]  %s746, 256, %s744, %s732, 128, 128, 8
        $region60: #{tpu_custom_call.1} parent=55 // pred_fallthru
          _
      $region56: #{tpu_custom_call.1} parent=5 // pred_fallthru
        _
      %p752 = scmp.le.s32.totalorder 2, %s18
      // Predicated region
      $region61: #{tpu_custom_call.1} parent=5 // pred_check
        %p753 = pneg %p752
      $region62: #{tpu_custom_call.1} parent=5 // pred_check_branch
        %755 = sbr.rel (%p753) target = $region64
      $region63: #{tpu_custom_call.1} parent=5 // pred_region
        %s756 = ssub.s32 %s18, 2
        // Predicated region
        $region65: #{tpu_custom_call.1} parent=63 // pred_check
          %p757 = pneg %p246
        $region66: #{tpu_custom_call.1} parent=63 // pred_check_branch
          %759 = sbr.rel (%p757) target = $region68
        $region67: #{tpu_custom_call.1} parent=63 // pred_region
          %s760 = sand.u32 %s231, 1
          %s761 = scalar_lea.sflag [#allocation3], %s760
          %s762 = sand.u32 %s231, 1
          %s763 = smul.addr %s762, 16
          %s764 = scalar_lea.vmem [#allocation2], %s763
          %765 = dma.done %s761, 256
        $region68: #{tpu_custom_call.1} parent=63 // pred_fallthru
          _
      $region64: #{tpu_custom_call.1} parent=5 // pred_fallthru
        _
    $region6: #{tpu_custom_call.1} parent=1 // loop_footer
      %s22 = sadd.s32 1, %s18
    $region7: #{tpu_custom_call.1} parent=1 // loop_footer_branch
      %17 = sbr.rel target = $region3
    $region8: #{tpu_custom_call.1} parent=1 // loop_exit
      _
    %766 = vsyncpa [#allocation3], 1
    %s767 = scalar_lea.sflag [#allocation3], 1
    %768 = vsyncpa %s767, 1

</llo_original>
